<compile_context>
chip_gen: v5e
topology: v5e:2x2
jax: 0.10.0
libtpu: 0.0.40
codegen_flags: <defaults>
</compile_context>

<pallas_src>
import math
import numpy as np
import jax
import jax.numpy as jnp
from jax.experimental import pallas as pl
from jax.experimental.pallas import tpu as pltpu

# ----- problem sizes -----
B, T, D, N_HEADS, D_HIDDEN = 2, 8, 32, 4, 64
D_HEAD = D // N_HEADS
SCALE = math.sqrt(D)          # torch scales by sqrt(d_key) == sqrt(d_tar), NOT per-head dim
INV_SCALE = 1.0 / SCALE
NEG = 1.0e9
EPS = 1e-5

# row indices into the packed parameter-row block of the R slab
(R_BO1, R_LN1G, R_LN1B, R_BV2, R_BO2, R_LN2G, R_LN2B,
 R_GW1, R_GB1, R_GW2, R_GB2, R_FB2, R_LN3G, R_LN3B) = range(14)
N_ROWS = 14


# ---------------- shared math helpers ----------------
def _layernorm(x, g, b):
    mu = jnp.mean(x, axis=-1, keepdims=True)
    var = jnp.mean((x - mu) ** 2, axis=-1, keepdims=True)   # biased variance, like torch LayerNorm
    return (x - mu) * jax.lax.rsqrt(var + EPS) * g + b


def _leaky_relu(x):
    return jnp.where(x >= 0, x, 0.01 * x)


# ---------------------------------- Pallas kernel ----------------------------------
def decoder_layer_kernel(x_ref, w_ref, m_ref, r_ref, out_ref):
    bt = x_ref.shape[0]                              # B*T rows in this block
    hbt = N_HEADS * bt
    x = x_ref[...]                                   # (BT, D)

    # ---- unpack constant slabs (static slices, all masks precomputed wrapper-side) ----
    w_qkv = w_ref[:, 0:3 * D]                        # (D, 3D) fused Wq|Wk|Wv
    wo1   = w_ref[:, 3 * D:4 * D]                    # (D, D)
    wv2   = w_ref[:, 4 * D:5 * D]                    # (D, D)
    wo2   = w_ref[:, 5 * D:6 * D]                    # (D, D)
    fw1   = w_ref[:, 6 * D:6 * D + D_HIDDEN]         # (D, D_HIDDEN)

    add_mask = m_ref[0:hbt, 0:bt]                    # (HBT, BT) causal + cross-batch, pre-scaled
    p2       = m_ref[0:hbt, bt:2 * bt]               # (HBT, BT) positional attn probs (constant)
    fw2      = m_ref[0:D_HIDDEN, 2 * bt:2 * bt + D]  # (D_HIDDEN, D)

    b_qkv = r_ref[0:1, :]                            # (1, 3D)
    fb1   = r_ref[1:2, 0:D_HIDDEN]                   # (1, D_HIDDEN)
    rows  = r_ref[2:2 + N_ROWS, 0:D]                 # (N_ROWS, D) bias / LN / gate rows
    hmask = r_ref[2 + N_ROWS:2 + N_ROWS + N_HEADS, 0:D]   # (H, D) head lane mask
    hmask3 = hmask[:, None, :]                       # (H, 1, D)

    def row(i):                                      # (1, D) packed parameter row
        return rows[i:i + 1, :]

    # ---------- block 1: residual causal multi-head self attention ----------
    qkv = jnp.dot(x, w_qkv, preferred_element_type=jnp.float32) + b_qkv
    q, k, v = qkv[:, 0:D], qkv[:, D:2 * D], qkv[:, 2 * D:3 * D]

    # head-masked query stack: one MXU pass for all heads & batches
    q_stack = (q[None, :, :] * hmask3).reshape(hbt, D)                    # (HBT, D)
    scores = jax.lax.dot_general(q_stack, k, (((1,), (1,)), ((), ())),
                                 preferred_element_type=jnp.float32)      # (HBT, BT)
    logits = scores * INV_SCALE - add_mask
    mx = jnp.max(logits, axis=-1, keepdims=True)
    e = jnp.exp(logits - mx)
    probs = e * pl.reciprocal(jnp.sum(e, axis=-1, keepdims=True), approx=True)
    ctx = jnp.dot(probs, v, preferred_element_type=jnp.float32)           # (HBT, D)
    # per-head concatenation == keep each head's own lanes and collapse the head axis
    ctx1 = jnp.sum(ctx.reshape(N_HEADS, bt, D) * hmask3, axis=0)          # (BT, D)
    attn1 = jnp.dot(ctx1, wo1, preferred_element_type=jnp.float32) + row(R_BO1)
    x1 = _layernorm(x + attn1, row(R_LN1G), row(R_LN1B))

    # ---------- block 2: residual positional attention (probs precomputed) ----------
    v2 = jnp.dot(x1, wv2, preferred_element_type=jnp.float32) + row(R_BV2)
    ctx2s = jnp.dot(p2, v2, preferred_element_type=jnp.float32)           # (HBT, D)
    ctx2 = jnp.sum(ctx2s.reshape(N_HEADS, bt, D) * hmask3, axis=0)        # (BT, D)
    attn2 = jnp.dot(ctx2, wo2, preferred_element_type=jnp.float32) + row(R_BO2)
    x2 = _layernorm(x1 + attn2, row(R_LN2G), row(R_LN2B))

    # ---------- block 3: highway feed-forward ----------
    gh = jnp.sum(x2 * row(R_GW1), axis=-1, keepdims=True) + row(R_GB1)    # gb1 replicated row
    gate = jax.nn.sigmoid(_leaky_relu(gh) * row(R_GW2) + row(R_GB2))
    hid = _leaky_relu(jnp.dot(x2, fw1, preferred_element_type=jnp.float32) + fb1)
    ff = jnp.dot(hid, fw2, preferred_element_type=jnp.float32) + row(R_FB2)
    out_ref[...] = _layernorm(x2 * gate + ff * (1.0 - gate), row(R_LN3G), row(R_LN3B))


# ---------------------------------- wrapper ----------------------------------
def _pos_attention_probs(pos, wq2, bq2, wk2, bk2):
    """Input-independent softmax probabilities of the positional self attention. (H, T, T)"""
    q = jnp.dot(pos, wq2, preferred_element_type=jnp.float32) + bq2
    k = jnp.dot(pos, wk2, preferred_element_type=jnp.float32) + bk2
    qh = q.reshape(T, N_HEADS, D_HEAD).transpose(1, 0, 2)       # (H, T, D_HEAD)
    kh = k.reshape(T, N_HEADS, D_HEAD).transpose(1, 0, 2)
    dots = jnp.einsum('htd,hsd->hts', qh, kh)                   # (H, T, T)
    mask = jnp.triu(jnp.ones((T, T), jnp.float32), k=1) * NEG
    dots = dots - mask[None]
    probs = jax.nn.softmax(dots / SCALE, axis=-1)
    alive = (jnp.sum((dots <= -5.0e8).astype(jnp.float32), axis=-1, keepdims=True)
             < float(T)).astype(jnp.float32)                    # identically 1 for causal mask
    return probs * alive


def transformer_nosrc_decoder_layer(x, pos, params):
    Bx = x.shape[0]
    assert x.shape == (Bx, T, D)
    (wq1, bq1, wk1, bk1, wv1, bv1, wo1, bo1, ln1_g, ln1_b,
     wq2, bq2, wk2, bk2, wv2, bv2, wo2, bo2, ln2_g, ln2_b,
     gw1, gb1, gw2, gb2, fw1, fb1, fw2, fb2, ln3_g, ln3_b) = params

    BT = Bx * T
    HBT = N_HEADS * BT

    # ---- wrapper-side precompute / parameter packing (all input independent) ----
    # positional attention probabilities, expanded to the packed (HBT, BT) block-diag layout
    probs2 = _pos_attention_probs(pos, wq2, bq2, wk2, bk2)                    # (H, T, T)
    eyeB = jnp.eye(Bx, dtype=jnp.float32)
    p2_stack = jnp.einsum('hts,bc->hbtcs', probs2, eyeB).reshape(HBT, BT)     # (HBT, BT)

    # pre-scaled additive mask: causal within batch + block-diagonal across batch
    causal = (jnp.arange(T)[None, :] > jnp.arange(T)[:, None]).astype(jnp.float32)   # (T, T)
    cross = 1.0 - eyeB                                                        # (B, B)
    m4 = jnp.maximum(cross[:, None, :, None], causal[None, :, None, :])       # (B, T, B, T)
    add_mask = jnp.tile(m4.reshape(BT, BT), (N_HEADS, 1)) * (NEG * INV_SCALE) # (HBT, BT)

    # per-head lane mask
    head_mask = (jnp.arange(D)[None, :] // D_HEAD ==
                 jnp.arange(N_HEADS)[:, None]).astype(jnp.float32)            # (H, D)

    # W slab: all (D, *) weights along lanes
    w_slab = jnp.concatenate([wq1, wk1, wv1, wo1, wv2, wo2, fw1], axis=1)     # (D, 6D + D_HIDDEN)

    # M slab: masks / positional probs / fw2
    m_rows = max(HBT, D_HIDDEN)

    def pad_rows(a):
        return jnp.pad(a, ((0, m_rows - a.shape[0]), (0, 0)))

    m_slab = jnp.concatenate([pad_rows(add_mask), pad_rows(p2_stack), pad_rows(fw2)],
                             axis=1)                                          # (m_rows, 2*BT + D)

    # R slab: fused bias row, fb1, 14 packed parameter rows, head mask — all padded to 3D lanes
    def pad_lanes(a):
        return jnp.pad(a, ((0, 0), (0, 3 * D - a.shape[1])))

    b_qkv = jnp.concatenate([bq1, bk1, bv1], axis=1)                          # (1, 3D)
    gb1_rep = jnp.broadcast_to(gb1, (1, D))                                   # fold (1,1) gb1 into a row
    rows = jnp.concatenate([bo1, ln1_g, ln1_b, bv2, bo2, ln2_g, ln2_b,
                            gw1, gb1_rep, gw2, gb2, fb2, ln3_g, ln3_b], axis=0)   # (14, D)
    r_slab = jnp.concatenate([b_qkv, pad_lanes(fb1), pad_lanes(rows),
                              pad_lanes(head_mask)], axis=0)                  # (2+14+H, 3D)

    consts = (w_slab, m_slab, r_slab)

    def full_spec(a):
        return pl.BlockSpec(a.shape, lambda i: (0, 0))

    out2d = pl.pallas_call(
        decoder_layer_kernel,
        out_shape=jax.ShapeDtypeStruct((BT, D), jnp.float32),
        grid=(1,),
        in_specs=[pl.BlockSpec((BT, D), lambda i: (0, 0))] + [full_spec(a) for a in consts],
        out_specs=pl.BlockSpec((BT, D), lambda i: (0, 0)),
        compiler_params=pltpu.CompilerParams(dimension_semantics=("arbitrary",)),
    )(x.reshape(BT, D), *consts)
    return out2d.reshape(Bx, T, D)


# ---------------------------------- plain-JAX reference ----------------------------------
def _linear_ref(x, w, b):
    return jnp.dot(x, w, preferred_element_type=jnp.float32) + b


def _mha_ref(q_in, k_in, v_in, wq, bq, wk, bk, wv, bv, wo, bo, add_mask):
    q = _linear_ref(q_in, wq, bq)
    k = _linear_ref(k_in, wk, bk)
    v = _linear_ref(v_in, wv, bv)
    outs = []
    for h in range(N_HEADS):
        sl = slice(h * D_HEAD, (h + 1) * D_HEAD)
        qh, kh, vh = q[:, sl], k[:, sl], v[:, sl]
        dots = jax.lax.dot_general(qh, kh, (((1,), (1,)), ((), ())),
                                   preferred_element_type=jnp.float32)
        dots = dots - add_mask
        logits = dots / SCALE
        probs = jax.nn.softmax(logits, axis=-1)
        alive = (jnp.sum((dots <= -5.0e8).astype(jnp.float32), axis=-1, keepdims=True)
                 < float(T)).astype(jnp.float32)
        probs = probs * alive
        outs.append(jnp.dot(probs, vh, preferred_element_type=jnp.float32))
    out = jnp.concatenate(outs, axis=-1)
    return _linear_ref(out, wo, bo)


def _layer_forward_ref(x, pos, add_mask,
                       wq1, bq1, wk1, bk1, wv1, bv1, wo1, bo1, ln1_g, ln1_b,
                       wq2, bq2, wk2, bk2, wv2, bv2, wo2, bo2, ln2_g, ln2_b,
                       gw1, gb1, gw2, gb2, fw1, fb1, fw2, fb2, ln3_g, ln3_b):
    attn1 = _mha_ref(x, x, x, wq1, bq1, wk1, bk1, wv1, bv1, wo1, bo1, add_mask)
    x1 = _layernorm(x + attn1, ln1_g, ln1_b)
    attn2 = _mha_ref(pos, pos, x1, wq2, bq2, wk2, bk2, wv2, bv2, wo2, bo2, add_mask)
    x2 = _layernorm(x1 + attn2, ln2_g, ln2_b)
    g_hidden = _leaky_relu(jnp.sum(x2 * gw1, axis=-1, keepdims=True) + gb1)
    g = jax.nn.sigmoid(g_hidden * gw2 + gb2)
    ff = _linear_ref(_leaky_relu(_linear_ref(x2, fw1, fb1)), fw2, fb2)
    return _layernorm(x2 * g + ff * (1.0 - g), ln3_g, ln3_b)


# ---------------------------------- parameter / input setup ----------------------------------
def positional_encodings(seqlen, feature):
    positions = jnp.arange(seqlen, dtype=jnp.float32)
    channels = jnp.arange(0, feature, 2, dtype=jnp.float32) / feature
    channels = 1.0 / (10000.0 ** channels)
    enc = positions[:, None] * channels[None, :]
    return jnp.concatenate([jnp.sin(enc), jnp.cos(enc)], axis=-1)   # (T, D)


def init_params(key):
    keys = iter(jax.random.split(key, 64))

    def lin(in_d, out_d):
        w = jax.random.normal(next(keys), (in_d, out_d), jnp.float32) / math.sqrt(in_d)
        b = jax.random.normal(next(keys), (1, out_d), jnp.float32) * 0.02
        return w, b

    params = []
    # self_attn MHA (wq, wk, wv, wo, each D->D) + LayerNorm
    for _ in range(4):
        params += list(lin(D, D))
    params += [jnp.ones((1, D), jnp.float32), jnp.zeros((1, D), jnp.float32)]
    # pos_selfattn MHA + LayerNorm
    for _ in range(4):
        params += list(lin(D, D))
    params += [jnp.ones((1, D), jnp.float32), jnp.zeros((1, D), jnp.float32)]
    # highway: gate FeedForward(D -> 1 -> D)
    gw1 = jax.random.normal(next(keys), (1, D), jnp.float32) / math.sqrt(D)   # linear1.weight (1, D)
    gb1 = jax.random.normal(next(keys), (1, 1), jnp.float32) * 0.02
    gw2 = jax.random.normal(next(keys), (1, D), jnp.float32)                  # linear2.weight (D,1)^T
    gb2 = jax.random.normal(next(keys), (1, D), jnp.float32) * 0.02
    params += [gw1, gb1, gw2, gb2]
    # highway: main FeedForward(D -> H -> D)
    params += list(lin(D, D_HIDDEN))
    params += list(lin(D_HIDDEN, D))
    # highway LayerNorm
    params += [jnp.ones((1, D), jnp.float32), jnp.zeros((1, D), jnp.float32)]
    return params


if __name__ == "__main__":
    key = jax.random.PRNGKey(0)
    kx, kp = jax.random.split(key)
    x = jax.random.normal(kx, (B, T, D), jnp.float32)
    params = init_params(kp)

    pos = positional_encodings(T, D)                                   # (T, D), same for every batch
    causal_mask = jnp.triu(jnp.ones((T, T), jnp.float32), k=1) * NEG   # attend_mode='only_attend_front'

    # plain-JAX reference (identical math to the torch module, eval mode)
    ref = jax.vmap(lambda xb: _layer_forward_ref(xb, pos, causal_mask, *params))(x)
    ref = jax.block_until_ready(ref)

    out = transformer_nosrc_decoder_layer(x, pos, params)
    out = jax.block_until_ready(out)
    assert out.shape == (B, T, D)
    assert np.allclose(np.asarray(out), np.asarray(ref), atol=1e-2, rtol=1e-2), (
        "kernel output mismatch vs reference")

    print("KERNEL_OK")
</pallas_src>

<mosaic_0001>
module attributes {stable_mosaic.version = 11 : i64} {
  func.func @decoder_layer_kernel(%arg0: i32, %arg1: memref<16x32xf32, #tpu.memory_space<vmem>>, %arg2: memref<32x256xf32, #tpu.memory_space<vmem>>, %arg3: memref<64x64xf32, #tpu.memory_space<vmem>>, %arg4: memref<20x96xf32, #tpu.memory_space<vmem>>, %arg5: memref<16x32xf32, #tpu.memory_space<vmem>>) attributes {dimension_semantics = [#tpu.dimension_semantics<arbitrary>], iteration_bounds = array<i64: 1>, scalar_prefetch = 0 : i64, scratch_operands = 0 : i64, tpu.core_type = #tpu.core_type<tc>, window_params = [{pipeline_mode = #tpu.pipeline_mode<synchronous>, transform_indices = @transform_0, window_bounds = array<i64: 16, 32>}, {pipeline_mode = #tpu.pipeline_mode<synchronous>, transform_indices = @transform_1, window_bounds = array<i64: 32, 256>}, {pipeline_mode = #tpu.pipeline_mode<synchronous>, transform_indices = @transform_2, window_bounds = array<i64: 64, 64>}, {pipeline_mode = #tpu.pipeline_mode<synchronous>, transform_indices = @transform_3, window_bounds = array<i64: 20, 96>}, {pipeline_mode = #tpu.pipeline_mode<synchronous>, transform_indices = @transform_4, window_bounds = array<i64: 16, 32>}]} {
    %c0 = arith.constant 0 : index
    %c0_0 = arith.constant 0 : index
    %0 = vector.load %arg1[%c0, %c0_0] : memref<16x32xf32, #tpu.memory_space<vmem>>, vector<16x32xf32>
    %c0_1 = arith.constant 0 : index
    %c0_2 = arith.constant 0 : index
    %1 = vector.load %arg2[%c0_1, %c0_2] : memref<32x256xf32, #tpu.memory_space<vmem>>, vector<32x96xf32>
    %c0_3 = arith.constant 0 : index
    %c96 = arith.constant 96 : index
    %2 = vector.load %arg2[%c0_3, %c96] : memref<32x256xf32, #tpu.memory_space<vmem>>, vector<32x32xf32>
    %c0_4 = arith.constant 0 : index
    %c128 = arith.constant 128 : index
    %3 = vector.load %arg2[%c0_4, %c128] : memref<32x256xf32, #tpu.memory_space<vmem>>, vector<32x32xf32>
    %c0_5 = arith.constant 0 : index
    %c160 = arith.constant 160 : index
    %4 = vector.load %arg2[%c0_5, %c160] : memref<32x256xf32, #tpu.memory_space<vmem>>, vector<32x32xf32>
    %c0_6 = arith.constant 0 : index
    %c192 = arith.constant 192 : index
    %5 = vector.load %arg2[%c0_6, %c192] : memref<32x256xf32, #tpu.memory_space<vmem>>, vector<32x64xf32>
    %c0_7 = arith.constant 0 : index
    %c0_8 = arith.constant 0 : index
    %6 = vector.load %arg3[%c0_7, %c0_8] : memref<64x64xf32, #tpu.memory_space<vmem>>, vector<64x16xf32>
    %c0_9 = arith.constant 0 : index
    %c16 = arith.constant 16 : index
    %7 = vector.load %arg3[%c0_9, %c16] : memref<64x64xf32, #tpu.memory_space<vmem>>, vector<64x16xf32>
    %c0_10 = arith.constant 0 : index
    %c32 = arith.constant 32 : index
    %8 = vector.load %arg3[%c0_10, %c32] : memref<64x64xf32, #tpu.memory_space<vmem>>, vector<64x32xf32>
    %c0_11 = arith.constant 0 : index
    %c0_12 = arith.constant 0 : index
    %9 = vector.load %arg4[%c0_11, %c0_12] : memref<20x96xf32, #tpu.memory_space<vmem>>, vector<1x96xf32>
    %c1 = arith.constant 1 : index
    %c0_13 = arith.constant 0 : index
    %10 = vector.load %arg4[%c1, %c0_13] : memref<20x96xf32, #tpu.memory_space<vmem>>, vector<1x64xf32>
    %c2 = arith.constant 2 : index
    %c0_14 = arith.constant 0 : index
    %11 = vector.load %arg4[%c2, %c0_14] : memref<20x96xf32, #tpu.memory_space<vmem>>, vector<14x32xf32>
    %c16_15 = arith.constant 16 : index
    %c0_16 = arith.constant 0 : index
    %12 = vector.load %arg4[%c16_15, %c0_16] : memref<20x96xf32, #tpu.memory_space<vmem>>, vector<4x32xf32>
    %13 = vector.shape_cast %12 : vector<4x32xf32> to vector<4x1x32xf32>
    %cst = arith.constant dense<0.000000e+00> : vector<16x96xf32>
    %14 = tpu.matmul %0, %1, %cst {dimension_numbers = #tpu.dot_dimension_numbers<[1], [0], [0], [1], [0, 0, 1, 1], [], []>} : vector<16x32xf32>, vector<32x96xf32>, vector<16x96xf32> -> vector<16x96xf32>
    %15 = vector.broadcast %9 : vector<1x96xf32> to vector<16x96xf32>
    %16 = arith.addf %14, %15 : vector<16x96xf32>
    %17 = vector.extract_strided_slice %16 {offsets = [0, 0], sizes = [16, 32], strides = [1, 1]} : vector<16x96xf32> to vector<16x32xf32>
    %18 = vector.extract_strided_slice %16 {offsets = [0, 32], sizes = [16, 32], strides = [1, 1]} : vector<16x96xf32> to vector<16x32xf32>
    %19 = vector.extract_strided_slice %16 {offsets = [0, 64], sizes = [16, 32], strides = [1, 1]} : vector<16x96xf32> to vector<16x32xf32>
    %20 = vector.shape_cast %17 : vector<16x32xf32> to vector<1x16x32xf32>
    %21 = vector.broadcast %20 : vector<1x16x32xf32> to vector<4x16x32xf32>
    %22 = vector.broadcast %13 : vector<4x1x32xf32> to vector<4x16x32xf32>
    %23 = arith.mulf %21, %22 : vector<4x16x32xf32>
    %24 = vector.shape_cast %23 : vector<4x16x32xf32> to vector<64x32xf32>
    %cst_17 = arith.constant dense<0.000000e+00> : vector<64x16xf32>
    %25 = tpu.matmul %24, %18, %cst_17 {dimension_numbers = #tpu.dot_dimension_numbers<[1], [1], [0], [0], [0, 0, 1, 0], [], []>} : vector<64x32xf32>, vector<16x32xf32>, vector<64x16xf32> -> vector<64x16xf32>
    %cst_18 = arith.constant 0.176776692 : f32
    %26 = vector.broadcast %cst_18 : f32 to vector<64x16xf32>
    %27 = arith.mulf %25, %26 : vector<64x16xf32>
    %28 = arith.subf %27, %6 : vector<64x16xf32>
    %cst_19 = arith.constant dense<0xFF800000> : vector<64xf32>
    %29 = vector.multi_reduction <maximumf>, %28, %cst_19 [1] : vector<64x16xf32> to vector<64xf32>
    %30 = vector.shape_cast %29 : vector<64xf32> to vector<64x1xf32>
    %31 = vector.broadcast %30 : vector<64x1xf32> to vector<64x16xf32>
    %32 = arith.subf %28, %31 : vector<64x16xf32>
    %33 = math.exp %32 : vector<64x16xf32>
    %cst_20 = arith.constant dense<0.000000e+00> : vector<64xf32>
    %34 = vector.multi_reduction <add>, %33, %cst_20 [1] : vector<64x16xf32> to vector<64xf32>
    %35 = vector.shape_cast %34 : vector<64xf32> to vector<64x1xf32>
    %36 = tpu.reciprocal %35 {approx = true} : vector<64x1xf32> -> vector<64x1xf32>
    %37 = vector.broadcast %36 : vector<64x1xf32> to vector<64x16xf32>
    %38 = arith.mulf %33, %37 : vector<64x16xf32>
    %cst_21 = arith.constant dense<0.000000e+00> : vector<64x32xf32>
    %39 = tpu.matmul %38, %19, %cst_21 {dimension_numbers = #tpu.dot_dimension_numbers<[1], [0], [0], [1], [0, 0, 1, 1], [], []>} : vector<64x16xf32>, vector<16x32xf32>, vector<64x32xf32> -> vector<64x32xf32>
    %40 = vector.shape_cast %39 : vector<64x32xf32> to vector<4x16x32xf32>
    %41 = vector.broadcast %13 : vector<4x1x32xf32> to vector<4x16x32xf32>
    %42 = arith.mulf %40, %41 : vector<4x16x32xf32>
    %cst_22 = arith.constant dense<0.000000e+00> : vector<16x32xf32>
    %43 = vector.multi_reduction <add>, %42, %cst_22 [0] : vector<4x16x32xf32> to vector<16x32xf32>
    %cst_23 = arith.constant dense<0.000000e+00> : vector<16x32xf32>
    %44 = tpu.matmul %43, %2, %cst_23 {dimension_numbers = #tpu.dot_dimension_numbers<[1], [0], [0], [1], [0, 0, 1, 1], [], []>} : vector<16x32xf32>, vector<32x32xf32>, vector<16x32xf32> -> vector<16x32xf32>
    %45 = vector.extract_strided_slice %11 {offsets = [0, 0], sizes = [1, 32], strides = [1, 1]} : vector<14x32xf32> to vector<1x32xf32>
    %46 = vector.broadcast %45 : vector<1x32xf32> to vector<16x32xf32>
    %47 = arith.addf %44, %46 : vector<16x32xf32>
    %48 = arith.addf %0, %47 : vector<16x32xf32>
    %49 = vector.extract_strided_slice %11 {offsets = [1, 0], sizes = [1, 32], strides = [1, 1]} : vector<14x32xf32> to vector<1x32xf32>
    %50 = vector.extract_strided_slice %11 {offsets = [2, 0], sizes = [1, 32], strides = [1, 1]} : vector<14x32xf32> to vector<1x32xf32>
    %cst_24 = arith.constant dense<0.000000e+00> : vector<16xf32>
    %51 = vector.multi_reduction <add>, %48, %cst_24 [1] : vector<16x32xf32> to vector<16xf32>
    %52 = vector.shape_cast %51 : vector<16xf32> to vector<16x1xf32>
    %cst_25 = arith.constant 3.200000e+01 : f32
    %53 = vector.broadcast %cst_25 : f32 to vector<16x1xf32>
    %54 = arith.divf %52, %53 : vector<16x1xf32>
    %55 = vector.broadcast %54 : vector<16x1xf32> to vector<16x32xf32>
    %56 = arith.subf %48, %55 : vector<16x32xf32>
    %57 = arith.mulf %56, %56 : vector<16x32xf32>
    %cst_26 = arith.constant dense<0.000000e+00> : vector<16xf32>
    %58 = vector.multi_reduction <add>, %57, %cst_26 [1] : vector<16x32xf32> to vector<16xf32>
    %59 = vector.shape_cast %58 : vector<16xf32> to vector<16x1xf32>
    %cst_27 = arith.constant 3.200000e+01 : f32
    %60 = vector.broadcast %cst_27 : f32 to vector<16x1xf32>
    %61 = arith.divf %59, %60 : vector<16x1xf32>
    %62 = vector.broadcast %54 : vector<16x1xf32> to vector<16x32xf32>
    %63 = arith.subf %48, %62 : vector<16x32xf32>
    %cst_28 = arith.constant 9.99999974E-6 : f32
    %64 = vector.broadcast %cst_28 : f32 to vector<16x1xf32>
    %65 = arith.addf %61, %64 : vector<16x1xf32>
    %66 = math.rsqrt %65 : vector<16x1xf32>
    %67 = vector.broadcast %66 : vector<16x1xf32> to vector<16x32xf32>
    %68 = arith.mulf %63, %67 : vector<16x32xf32>
    %69 = vector.broadcast %49 : vector<1x32xf32> to vector<16x32xf32>
    %70 = arith.mulf %68, %69 : vector<16x32xf32>
    %71 = vector.broadcast %50 : vector<1x32xf32> to vector<16x32xf32>
    %72 = arith.addf %70, %71 : vector<16x32xf32>
    %cst_29 = arith.constant dense<0.000000e+00> : vector<16x32xf32>
    %73 = tpu.matmul %72, %3, %cst_29 {dimension_numbers = #tpu.dot_dimension_numbers<[1], [0], [0], [1], [0, 0, 1, 1], [], []>} : vector<16x32xf32>, vector<32x32xf32>, vector<16x32xf32> -> vector<16x32xf32>
    %74 = vector.extract_strided_slice %11 {offsets = [3, 0], sizes = [1, 32], strides = [1, 1]} : vector<14x32xf32> to vector<1x32xf32>
    %75 = vector.broadcast %74 : vector<1x32xf32> to vector<16x32xf32>
    %76 = arith.addf %73, %75 : vector<16x32xf32>
    %cst_30 = arith.constant dense<0.000000e+00> : vector<64x32xf32>
    %77 = tpu.matmul %7, %76, %cst_30 {dimension_numbers = #tpu.dot_dimension_numbers<[1], [0], [0], [1], [0, 0, 1, 1], [], []>} : vector<64x16xf32>, vector<16x32xf32>, vector<64x32xf32> -> vector<64x32xf32>
    %78 = vector.shape_cast %77 : vector<64x32xf32> to vector<4x16x32xf32>
    %79 = vector.broadcast %13 : vector<4x1x32xf32> to vector<4x16x32xf32>
    %80 = arith.mulf %78, %79 : vector<4x16x32xf32>
    %cst_31 = arith.constant dense<0.000000e+00> : vector<16x32xf32>
    %81 = vector.multi_reduction <add>, %80, %cst_31 [0] : vector<4x16x32xf32> to vector<16x32xf32>
    %cst_32 = arith.constant dense<0.000000e+00> : vector<16x32xf32>
    %82 = tpu.matmul %81, %4, %cst_32 {dimension_numbers = #tpu.dot_dimension_numbers<[1], [0], [0], [1], [0, 0, 1, 1], [], []>} : vector<16x32xf32>, vector<32x32xf32>, vector<16x32xf32> -> vector<16x32xf32>
    %83 = vector.extract_strided_slice %11 {offsets = [4, 0], sizes = [1, 32], strides = [1, 1]} : vector<14x32xf32> to vector<1x32xf32>
    %84 = vector.broadcast %83 : vector<1x32xf32> to vector<16x32xf32>
    %85 = arith.addf %82, %84 : vector<16x32xf32>
    %86 = arith.addf %72, %85 : vector<16x32xf32>
    %87 = vector.extract_strided_slice %11 {offsets = [5, 0], sizes = [1, 32], strides = [1, 1]} : vector<14x32xf32> to vector<1x32xf32>
    %88 = vector.extract_strided_slice %11 {offsets = [6, 0], sizes = [1, 32], strides = [1, 1]} : vector<14x32xf32> to vector<1x32xf32>
    %cst_33 = arith.constant dense<0.000000e+00> : vector<16xf32>
    %89 = vector.multi_reduction <add>, %86, %cst_33 [1] : vector<16x32xf32> to vector<16xf32>
    %90 = vector.shape_cast %89 : vector<16xf32> to vector<16x1xf32>
    %cst_34 = arith.constant 3.200000e+01 : f32
    %91 = vector.broadcast %cst_34 : f32 to vector<16x1xf32>
    %92 = arith.divf %90, %91 : vector<16x1xf32>
    %93 = vector.broadcast %92 : vector<16x1xf32> to vector<16x32xf32>
    %94 = arith.subf %86, %93 : vector<16x32xf32>
    %95 = arith.mulf %94, %94 : vector<16x32xf32>
    %cst_35 = arith.constant dense<0.000000e+00> : vector<16xf32>
    %96 = vector.multi_reduction <add>, %95, %cst_35 [1] : vector<16x32xf32> to vector<16xf32>
    %97 = vector.shape_cast %96 : vector<16xf32> to vector<16x1xf32>
    %cst_36 = arith.constant 3.200000e+01 : f32
    %98 = vector.broadcast %cst_36 : f32 to vector<16x1xf32>
    %99 = arith.divf %97, %98 : vector<16x1xf32>
    %100 = vector.broadcast %92 : vector<16x1xf32> to vector<16x32xf32>
    %101 = arith.subf %86, %100 : vector<16x32xf32>
    %cst_37 = arith.constant 9.99999974E-6 : f32
    %102 = vector.broadcast %cst_37 : f32 to vector<16x1xf32>
    %103 = arith.addf %99, %102 : vector<16x1xf32>
    %104 = math.rsqrt %103 : vector<16x1xf32>
    %105 = vector.broadcast %104 : vector<16x1xf32> to vector<16x32xf32>
    %106 = arith.mulf %101, %105 : vector<16x32xf32>
    %107 = vector.broadcast %87 : vector<1x32xf32> to vector<16x32xf32>
    %108 = arith.mulf %106, %107 : vector<16x32xf32>
    %109 = vector.broadcast %88 : vector<1x32xf32> to vector<16x32xf32>
    %110 = arith.addf %108, %109 : vector<16x32xf32>
    %111 = vector.extract_strided_slice %11 {offsets = [7, 0], sizes = [1, 32], strides = [1, 1]} : vector<14x32xf32> to vector<1x32xf32>
    %112 = vector.broadcast %111 : vector<1x32xf32> to vector<16x32xf32>
    %113 = arith.mulf %110, %112 : vector<16x32xf32>
    %cst_38 = arith.constant dense<0.000000e+00> : vector<16xf32>
    %114 = vector.multi_reduction <add>, %113, %cst_38 [1] : vector<16x32xf32> to vector<16xf32>
    %115 = vector.shape_cast %114 : vector<16xf32> to vector<16x1xf32>
    %116 = vector.extract_strided_slice %11 {offsets = [8, 0], sizes = [1, 32], strides = [1, 1]} : vector<14x32xf32> to vector<1x32xf32>
    %117 = vector.broadcast %115 : vector<16x1xf32> to vector<16x32xf32>
    %118 = vector.broadcast %116 : vector<1x32xf32> to vector<16x32xf32>
    %119 = arith.addf %117, %118 : vector<16x32xf32>
    %cst_39 = arith.constant 0.000000e+00 : f32
    %120 = vector.broadcast %cst_39 : f32 to vector<16x32xf32>
    %121 = arith.cmpf oge, %119, %120 : vector<16x32xf32>
    %cst_40 = arith.constant 0.00999999977 : f32
    %122 = vector.broadcast %cst_40 : f32 to vector<16x32xf32>
    %123 = arith.mulf %122, %119 : vector<16x32xf32>
    %124 = arith.select %121, %119, %123 : vector<16x32xi1>, vector<16x32xf32>
    %125 = vector.extract_strided_slice %11 {offsets = [9, 0], sizes = [1, 32], strides = [1, 1]} : vector<14x32xf32> to vector<1x32xf32>
    %126 = vector.broadcast %125 : vector<1x32xf32> to vector<16x32xf32>
    %127 = arith.mulf %124, %126 : vector<16x32xf32>
    %128 = vector.extract_strided_slice %11 {offsets = [10, 0], sizes = [1, 32], strides = [1, 1]} : vector<14x32xf32> to vector<1x32xf32>
    %129 = vector.broadcast %128 : vector<1x32xf32> to vector<16x32xf32>
    %130 = arith.addf %127, %129 : vector<16x32xf32>
    %131 = arith.negf %130 : vector<16x32xf32>
    %132 = math.exp %131 : vector<16x32xf32>
    %cst_41 = arith.constant 1.000000e+00 : f32
    %133 = vector.broadcast %cst_41 : f32 to vector<16x32xf32>
    %134 = arith.addf %133, %132 : vector<16x32xf32>
    %135 = arith.divf %133, %134 : vector<16x32xf32>
    %cst_42 = arith.constant dense<0.000000e+00> : vector<16x64xf32>
    %136 = tpu.matmul %110, %5, %cst_42 {dimension_numbers = #tpu.dot_dimension_numbers<[1], [0], [0], [1], [0, 0, 1, 1], [], []>} : vector<16x32xf32>, vector<32x64xf32>, vector<16x64xf32> -> vector<16x64xf32>
    %137 = vector.broadcast %10 : vector<1x64xf32> to vector<16x64xf32>
    %138 = arith.addf %136, %137 : vector<16x64xf32>
    %cst_43 = arith.constant 0.000000e+00 : f32
    %139 = vector.broadcast %cst_43 : f32 to vector<16x64xf32>
    %140 = arith.cmpf oge, %138, %139 : vector<16x64xf32>
    %cst_44 = arith.constant 0.00999999977 : f32
    %141 = vector.broadcast %cst_44 : f32 to vector<16x64xf32>
    %142 = arith.mulf %141, %138 : vector<16x64xf32>
    %143 = arith.select %140, %138, %142 : vector<16x64xi1>, vector<16x64xf32>
    %cst_45 = arith.constant dense<0.000000e+00> : vector<16x32xf32>
    %144 = tpu.matmul %143, %8, %cst_45 {dimension_numbers = #tpu.dot_dimension_numbers<[1], [0], [0], [1], [0, 0, 1, 1], [], []>} : vector<16x64xf32>, vector<64x32xf32>, vector<16x32xf32> -> vector<16x32xf32>
    %145 = vector.extract_strided_slice %11 {offsets = [11, 0], sizes = [1, 32], strides = [1, 1]} : vector<14x32xf32> to vector<1x32xf32>
    %146 = vector.broadcast %145 : vector<1x32xf32> to vector<16x32xf32>
    %147 = arith.addf %144, %146 : vector<16x32xf32>
    %148 = arith.mulf %110, %135 : vector<16x32xf32>
    %cst_46 = arith.constant 1.000000e+00 : f32
    %149 = vector.broadcast %cst_46 : f32 to vector<16x32xf32>
    %150 = arith.subf %149, %135 : vector<16x32xf32>
    %151 = arith.mulf %147, %150 : vector<16x32xf32>
    %152 = arith.addf %148, %151 : vector<16x32xf32>
    %153 = vector.extract_strided_slice %11 {offsets = [12, 0], sizes = [1, 32], strides = [1, 1]} : vector<14x32xf32> to vector<1x32xf32>
    %154 = vector.extract_strided_slice %11 {offsets = [13, 0], sizes = [1, 32], strides = [1, 1]} : vector<14x32xf32> to vector<1x32xf32>
    %cst_47 = arith.constant dense<0.000000e+00> : vector<16xf32>
    %155 = vector.multi_reduction <add>, %152, %cst_47 [1] : vector<16x32xf32> to vector<16xf32>
    %156 = vector.shape_cast %155 : vector<16xf32> to vector<16x1xf32>
    %cst_48 = arith.constant 3.200000e+01 : f32
    %157 = vector.broadcast %cst_48 : f32 to vector<16x1xf32>
    %158 = arith.divf %156, %157 : vector<16x1xf32>
    %159 = vector.broadcast %158 : vector<16x1xf32> to vector<16x32xf32>
    %160 = arith.subf %152, %159 : vector<16x32xf32>
    %161 = arith.mulf %160, %160 : vector<16x32xf32>
    %cst_49 = arith.constant dense<0.000000e+00> : vector<16xf32>
    %162 = vector.multi_reduction <add>, %161, %cst_49 [1] : vector<16x32xf32> to vector<16xf32>
    %163 = vector.shape_cast %162 : vector<16xf32> to vector<16x1xf32>
    %cst_50 = arith.constant 3.200000e+01 : f32
    %164 = vector.broadcast %cst_50 : f32 to vector<16x1xf32>
    %165 = arith.divf %163, %164 : vector<16x1xf32>
    %166 = vector.broadcast %158 : vector<16x1xf32> to vector<16x32xf32>
    %167 = arith.subf %152, %166 : vector<16x32xf32>
    %cst_51 = arith.constant 9.99999974E-6 : f32
    %168 = vector.broadcast %cst_51 : f32 to vector<16x1xf32>
    %169 = arith.addf %165, %168 : vector<16x1xf32>
    %170 = math.rsqrt %169 : vector<16x1xf32>
    %171 = vector.broadcast %170 : vector<16x1xf32> to vector<16x32xf32>
    %172 = arith.mulf %167, %171 : vector<16x32xf32>
    %173 = vector.broadcast %153 : vector<1x32xf32> to vector<16x32xf32>
    %174 = arith.mulf %172, %173 : vector<16x32xf32>
    %175 = vector.broadcast %154 : vector<1x32xf32> to vector<16x32xf32>
    %176 = arith.addf %174, %175 : vector<16x32xf32>
    %c0_52 = arith.constant 0 : index
    %c0_53 = arith.constant 0 : index
    %177 = vector.load %arg5[%c0_52, %c0_53] : memref<16x32xf32, #tpu.memory_space<vmem>>, vector<16x32xf32>
    tpu.vector_store %arg5[%c0_52, %c0_53], %176 {strides = array<i32>} : memref<16x32xf32, #tpu.memory_space<vmem>>, vector<16x32xf32>,
    return
  }
  func.func @transform_0(%arg0: i32) -> (i32, i32) {
    %c0_i32 = arith.constant 0 : i32
    %c0_i32_0 = arith.constant 0 : i32
    %c0_i32_1 = arith.constant 0 : i32
    return %c0_i32, %c0_i32_0 : i32, i32
  }
  func.func @transform_1(%arg0: i32) -> (i32, i32) {
    %c0_i32 = arith.constant 0 : i32
    %c0_i32_0 = arith.constant 0 : i32
    %c0_i32_1 = arith.constant 0 : i32
    return %c0_i32, %c0_i32_0 : i32, i32
  }
  func.func @transform_2(%arg0: i32) -> (i32, i32) {
    %c0_i32 = arith.constant 0 : i32
    %c0_i32_0 = arith.constant 0 : i32
    %c0_i32_1 = arith.constant 0 : i32
    return %c0_i32, %c0_i32_0 : i32, i32
  }
  func.func @transform_3(%arg0: i32) -> (i32, i32) {
    %c0_i32 = arith.constant 0 : i32
    %c0_i32_0 = arith.constant 0 : i32
    %c0_i32_1 = arith.constant 0 : i32
    return %c0_i32, %c0_i32_0 : i32, i32
  }
  func.func @transform_4(%arg0: i32) -> (i32, i32) {
    %c0_i32 = arith.constant 0 : i32
    %c0_i32_0 = arith.constant 0 : i32
    %c0_i32_1 = arith.constant 0 : i32
    return %c0_i32, %c0_i32_0 : i32, i32
  }
}

</mosaic_0001>

<llo_original>
// kernel: tpu_custom_call.1
$region0: #{tpu_custom_call.1}
  #allocation0 [shape = 'u32[]', space=smem, size = 0x4, offset = 0x4, fixed_abs, tag = 'smem constant byte address 0x4 - core index']
  #allocation1 [shape = 'u32[72,128]{1,0:T(1,128)}', space=vmem, size = 0x9000, scoped, tag = 'internal scratch']
  %s0 = inlined_call_operand.hbm [shape: f32[16,32], index: 0, kind: input, shape index: {}]
  %s1 = inlined_call_operand.hbm [shape: f32[32,256], index: 1, kind: input, shape index: {}]
  %s2 = inlined_call_operand.hbm [shape: f32[64,64], index: 2, kind: input, shape index: {}]
  %s3 = inlined_call_operand.hbm [shape: f32[20,96], index: 3, kind: input, shape index: {}]
  %s4 = inlined_call_operand.hbm [shape: f32[16,32], index: 4, kind: output, shape index: {}]
  %s5 = sld [smem:[#allocation0]]
  $region42: #{tpu_custom_call.1} parent=0
    _
  %s7 = ssub.s32 1, %s5
  %s8 = scalar_select 0, %s7, %s5
  $region1: #{tpu_custom_call.1} parent=0
    #allocation2 [shape = 'u8[8192]{0}', space=vmem, size = 0x2000, scoped, tag = 'input window, operand 0, single buffered']
    #allocation3 [shape = 's32[1]{0}', space=sflag, size = 0x4, scoped, tag = 'scoped memory for tpu_custom_call.1']
    #allocation4 [shape = 's32[1]{0}', space=sflag, size = 0x4, scoped, tag = 'scoped memory for tpu_custom_call.1']
    #allocation5 [shape = 'u8[32768]{0}', space=vmem, size = 0x8000, scoped, tag = 'input window, operand 1, single buffered']
    #allocation6 [shape = 's32[1]{0}', space=sflag, size = 0x4, scoped, tag = 'scoped memory for tpu_custom_call.1']
    #allocation7 [shape = 'u8[32768]{0}', space=vmem, size = 0x8000, scoped, tag = 'input window, operand 2, single buffered']
    #allocation8 [shape = 'u8[12288]{0}', space=vmem, size = 0x3000, scoped, tag = 'input window, operand 3, single buffered']
    #allocation9 [shape = 's32[1]{0}', space=sflag, size = 0x4, scoped, tag = 'scoped memory for tpu_custom_call.1']
    #allocation10 [shape = 'u8[8192]{0}', space=vmem, size = 0x2000, scoped, tag = 'output window, operand 0, single buffered']
    %9 = vsyncpa [#allocation3], 0
    %10 = vsyncpa [#allocation6], 0
    %11 = vsyncpa [#allocation9], 0
    %12 = vsyncpa [#allocation4], 0
    // Predicated region
    $region2: #{tpu_custom_call.1} parent=1 // pred_check
      _
    $region3: #{tpu_custom_call.1} parent=1 // pred_check_branch
      %14 = sbr.rel (0) target = $region5
    $region4: #{tpu_custom_call.1} parent=1 // pred_region
      %16 = vsyncadd [#allocation3], 0
      %s17 = sshll.u32 %s0, 4
      %s18 = int_to_ptr.hbm [resolvable:$true] %s17
      %s19 = sshll.u32 [#allocation2], 4
      %s20 = int_to_ptr.vmem [resolvable:$true] %s19
      %25 = dma.hbm_to_vmem [thread:$0]  %s18, 256, %s20, [#allocation3], 128, 128, 8
    $region5: #{tpu_custom_call.1} parent=1 // pred_fallthru
      _
    // Predicated region
    $region6: #{tpu_custom_call.1} parent=1 // pred_check
      _
    $region7: #{tpu_custom_call.1} parent=1 // pred_check_branch
      %27 = sbr.rel (0) target = $region9
    $region8: #{tpu_custom_call.1} parent=1 // pred_region
      %29 = vsyncadd [#allocation6], 0
      %s30 = sshll.u32 %s1, 4
      %s31 = int_to_ptr.hbm [resolvable:$true] %s30
      %s32 = sshll.u32 [#allocation5], 4
      %s33 = int_to_ptr.vmem [resolvable:$true] %s32
      %38 = dma.hbm_to_vmem [thread:$0]  %s31, 1024, %s33, [#allocation6], 256, 256, 16
    $region9: #{tpu_custom_call.1} parent=1 // pred_fallthru
      _
    // Predicated region
    $region10: #{tpu_custom_call.1} parent=1 // pred_check
      _
    $region11: #{tpu_custom_call.1} parent=1 // pred_check_branch
      %40 = sbr.rel (0) target = $region13
    $region12: #{tpu_custom_call.1} parent=1 // pred_region
      %42 = vsyncadd [#allocation6], 0
      %s43 = sshll.u32 %s2, 4
      %s44 = int_to_ptr.hbm [resolvable:$true] %s43
      %s45 = sshll.u32 [#allocation7], 4
      %s46 = int_to_ptr.vmem [resolvable:$true] %s45
      %51 = dma.hbm_to_vmem [thread:$0]  %s44, 1024, %s46, [#allocation6], 128, 128, 8
    $region13: #{tpu_custom_call.1} parent=1 // pred_fallthru
      _
    // Predicated region
    $region14: #{tpu_custom_call.1} parent=1 // pred_check
      _
    $region15: #{tpu_custom_call.1} parent=1 // pred_check_branch
      %53 = sbr.rel (0) target = $region17
    $region16: #{tpu_custom_call.1} parent=1 // pred_region
      %55 = vsyncadd [#allocation9], 0
      %s56 = sshll.u32 %s3, 4
      %s57 = int_to_ptr.hbm [resolvable:$true] %s56
      %s58 = sshll.u32 [#allocation8], 4
      %s59 = int_to_ptr.vmem [resolvable:$true] %s58
      %64 = dma.hbm_to_vmem [thread:$0]  %s57, 384, %s59, [#allocation9], 128, 128, 8
    $region17: #{tpu_custom_call.1} parent=1 // pred_fallthru
      _
    // Predicated region
    $region18: #{tpu_custom_call.1} parent=1 // pred_check
      _
    $region19: #{tpu_custom_call.1} parent=1 // pred_check_branch
      %66 = sbr.rel (0) target = $region21
    $region20: #{tpu_custom_call.1} parent=1 // pred_region
      %68 = dma.done [#allocation3], 256
    $region21: #{tpu_custom_call.1} parent=1 // pred_fallthru
      _
    // Predicated region
    $region22: #{tpu_custom_call.1} parent=1 // pred_check
      _
    $region23: #{tpu_custom_call.1} parent=1 // pred_check_branch
      %70 = sbr.rel (0) target = $region25
    $region24: #{tpu_custom_call.1} parent=1 // pred_region
      %72 = dma.done [#allocation6], 1024
    $region25: #{tpu_custom_call.1} parent=1 // pred_fallthru
      _
    // Predicated region
    $region26: #{tpu_custom_call.1} parent=1 // pred_check
      _
    $region27: #{tpu_custom_call.1} parent=1 // pred_check_branch
      %74 = sbr.rel (0) target = $region29
    $region28: #{tpu_custom_call.1} parent=1 // pred_region
      %76 = dma.done [#allocation6], 1024
    $region29: #{tpu_custom_call.1} parent=1 // pred_fallthru
      _
    // Predicated region
    $region30: #{tpu_custom_call.1} parent=1 // pred_check
      _
    $region31: #{tpu_custom_call.1} parent=1 // pred_check_branch
      %78 = sbr.rel (0) target = $region33
    $region32: #{tpu_custom_call.1} parent=1 // pred_region
      %80 = dma.done [#allocation9], 384
    $region33: #{tpu_custom_call.1} parent=1 // pred_fallthru
      _
    %v81 = vld [vmem:[#allocation2] sm:$0xff]
    %v82 = vld [vmem:[#allocation2 + $0x8] sm:$0xff]
    %v83 = vld [vmem:[#allocation5] sm:$0xff]
    %v84 = vld [vmem:[#allocation5 + $0x10] sm:$0xff]
    %v85 = vld [vmem:[#allocation5 + $0x20] sm:$0xff]
    %v86 = vld [vmem:[#allocation5 + $0x30] sm:$0xff]
    %v87 = vld [vmem:[#allocation5 + $0x8] sm:$0xff]
    %v88 = vld [vmem:[#allocation5 + $0x18] sm:$0xff]
    %v89 = vld [vmem:[#allocation5 + $0x28] sm:$0xff]
    %v90 = vld [vmem:[#allocation5 + $0x38] sm:$0xff]
    %v91 = vld [vmem:[#allocation7] sm:$0xff]
    %v92 = vld [vmem:[#allocation7 + $0x8] sm:$0xff]
    %v93 = vld [vmem:[#allocation7 + $0x10] sm:$0xff]
    %v94 = vld [vmem:[#allocation7 + $0x18] sm:$0xff]
    %v95 = vld [vmem:[#allocation7 + $0x20] sm:$0xff]
    %v96 = vld [vmem:[#allocation7 + $0x28] sm:$0xff]
    %v97 = vld [vmem:[#allocation7 + $0x30] sm:$0xff]
    %v98 = vld [vmem:[#allocation7 + $0x38] sm:$0xff]
    %v99 = vld [vmem:[#allocation8] sm:$0x1]
    %v100 = vld [vmem:[#allocation8 + $0x1] sm:$0x1]
    %v101 = vld [vmem:[#allocation8 + $0x2] sm:$0xff]
    %v102 = vld [vmem:[#allocation8 + $0xa] sm:$0x3f]
    %v103 = vld [vmem:[#allocation8 + $0x10] sm:$0xf]
    %v105 = vrot.slane %v103, 1
    %v106 = vrot.slane %v103, 2
    %v107 = vrot.slane %v103, 3
    %v108 = vperm.slane %v99, 0
    %vm109 = vcmask 261120
    %v111 = vsel %vm109, %v81, 0
    %v114 = vsel %vm109, %v82, 0
    %116 = vmatpush.msra.mxu0 0.0
    %117 = vmatpush.msra.mxu0 0.0
    %118 = vmatpush.msra.mxu0 0.0
    %119 = vmatpush.msra.mxu0 0.0
    %120 = vmatpush.msra.mxu0 0.0
    %121 = vmatpush.msra.mxu0 0.0
    %122 = vmatpush.msra.mxu0 0.0
    %123 = vmatpush.msra.mxu0 0.0
    %124 = vmatpush.msra.mxu0 0.0
    %125 = vmatpush.msra.mxu0 0.0
    %126 = vmatpush.msra.mxu0 0.0
    %127 = vmatpush.msra.mxu0 0.0
    %128 = vmatpush.msra.mxu0 %v86
    %129 = vmatpush.msra.mxu0 %v85
    %130 = vmatpush.msra.mxu0 %v84
    %131 = vmatpush.msra.mxu0 %v83
    %132 = vmatmul.f32.gmra.mxu0 %v111
    %v133 = vpop.f32.mrf.mxu0
    %v134 = vadd.f32 %v108, %v133
    %135 = vmatmul.f32.gmra.mxu0 %v114
    %v136 = vpop.f32.mrf.mxu0
    %v137 = vadd.f32 %v108, %v136
    %138 = vdwg.mxu0
    %v139 = vperm.slane %v103, 0
    %v140 = vperm.slane %v105, 0
    %v141 = vperm.slane %v106, 0
    %v142 = vperm.slane %v107, 0
    %v147 = vmul.f32 %v134, %v139
    %v148 = vmul.f32 %v137, %v139
    %v149 = vmul.f32 %v134, %v140
    %v150 = vmul.f32 %v137, %v140
    %v151 = vmul.f32 %v134, %v141
    %v152 = vmul.f32 %v137, %v141
    %v153 = vmul.f32 %v134, %v142
    %v154 = vmul.f32 %v137, %v142
    %157 = vrot.lane.b32.xlu0 %v134, 96
    %v158 = vpop.permute.xlu0 %157
    %159 = vrot.lane.b32.xlu0 %v137, 96
    %v160 = vpop.permute.xlu0 %159
    %v162 = vsel %vm109, %v147, 0
    %v165 = vsel %vm109, %v148, 0
    %v168 = vsel %vm109, %v149, 0
    %v171 = vsel %vm109, %v150, 0
    %v174 = vsel %vm109, %v151, 0
    %v177 = vsel %vm109, %v152, 0
    %v180 = vsel %vm109, %v153, 0
    %v183 = vsel %vm109, %v154, 0
    %v185 = vsel %vm109, %v158, 0
    %v187 = vsel %vm109, %v160, 0
    %189 = vmatpush.xpose.msra.mxu0 0.0
    %190 = vmatpush.xpose.msra.mxu0 0.0
    %191 = vmatpush.xpose.msra.mxu0 0.0
    %192 = vmatpush.xpose.msra.mxu0 0.0
    %193 = vmatpush.xpose.msra.mxu0 0.0
    %194 = vmatpush.xpose.msra.mxu0 0.0
    %195 = vmatpush.xpose.msra.mxu0 0.0
    %196 = vmatpush.xpose.msra.mxu0 0.0
    %197 = vmatpush.xpose.msra.mxu0 0.0
    %198 = vmatpush.xpose.msra.mxu0 0.0
    %199 = vmatpush.xpose.msra.mxu0 0.0
    %200 = vmatpush.xpose.msra.mxu0 0.0
    %201 = vmatpush.xpose.msra.mxu0 0.0
    %202 = vmatpush.xpose.msra.mxu0 0.0
    %203 = vmatpush.xpose.msra.mxu0 %v187
    %204 = vmatpush.xpose.msra.mxu0 %v185
    %205 = vmatmul.f32.gmra.mxu0 %v162
    %v206 = vpop.f32.mrf.mxu0
    %v207 = vadd.f32 0.0, %v206
    %208 = vmatmul.f32.gmra.mxu0 %v165
    %v209 = vpop.f32.mrf.mxu0
    %v210 = vadd.f32 0.0, %v209
    %211 = vmatmul.f32.gmra.mxu0 %v168
    %v212 = vpop.f32.mrf.mxu0
    %v213 = vadd.f32 0.0, %v212
    %214 = vmatmul.f32.gmra.mxu0 %v171
    %v215 = vpop.f32.mrf.mxu0
    %v216 = vadd.f32 0.0, %v215
    %217 = vmatmul.f32.gmra.mxu0 %v174
    %v218 = vpop.f32.mrf.mxu0
    %v219 = vadd.f32 0.0, %v218
    %220 = vmatmul.f32.gmra.mxu0 %v177
    %v221 = vpop.f32.mrf.mxu0
    %v222 = vadd.f32 0.0, %v221
    %223 = vmatmul.f32.gmra.mxu0 %v180
    %v224 = vpop.f32.mrf.mxu0
    %v225 = vadd.f32 0.0, %v224
    %226 = vmatmul.f32.gmra.mxu0 %v183
    %v227 = vpop.f32.mrf.mxu0
    %v228 = vadd.f32 0.0, %v227
    %229 = vdwg.mxu0
    %v230 = vmul.f32 %v207, 0.17677669
    %v231 = vmul.f32 %v210, 0.17677669
    %v232 = vmul.f32 %v213, 0.17677669
    %v233 = vmul.f32 %v216, 0.17677669
    %v234 = vmul.f32 %v219, 0.17677669
    %v235 = vmul.f32 %v222, 0.17677669
    %v236 = vmul.f32 %v225, 0.17677669
    %v237 = vmul.f32 %v228, 0.17677669
    %v238 = vsub.f32 %v230, %v91
    %v239 = vsub.f32 %v231, %v92
    %v240 = vsub.f32 %v232, %v93
    %v241 = vsub.f32 %v233, %v94
    %v242 = vsub.f32 %v234, %v95
    %v243 = vsub.f32 %v235, %v96
    %v244 = vsub.f32 %v236, %v97
    %v245 = vsub.f32 %v237, %v98
    %vm246 = vcmask 130048
    %v247 = vsel %vm246, %v238, -inf
    %248 = vmax.xlane.f32.xlu0 %v247
    %v249 = vpop.xlane.xlu0 %248
    %v250 = vsel %vm246, %v239, -inf
    %251 = vmax.xlane.f32.xlu0 %v250
    %v252 = vpop.xlane.xlu0 %251
    %v253 = vsel %vm246, %v240, -inf
    %254 = vmax.xlane.f32.xlu0 %v253
    %v255 = vpop.xlane.xlu0 %254
    %v256 = vsel %vm246, %v241, -inf
    %257 = vmax.xlane.f32.xlu0 %v256
    %v258 = vpop.xlane.xlu0 %257
    %v259 = vsel %vm246, %v242, -inf
    %260 = vmax.xlane.f32.xlu0 %v259
    %v261 = vpop.xlane.xlu0 %260
    %v262 = vsel %vm246, %v243, -inf
    %263 = vmax.xlane.f32.xlu0 %v262
    %v264 = vpop.xlane.xlu0 %263
    %v265 = vsel %vm246, %v244, -inf
    %266 = vmax.xlane.f32.xlu0 %v265
    %v267 = vpop.xlane.xlu0 %266
    %v268 = vsel %vm246, %v245, -inf
    %269 = vmax.xlane.f32.xlu0 %v268
    %v270 = vpop.xlane.xlu0 %269
    %v271 = vsub.f32 %v238, %v249
    %v272 = vsub.f32 %v239, %v252
    %v273 = vsub.f32 %v240, %v255
    %v274 = vsub.f32 %v241, %v258
    %v275 = vsub.f32 %v242, %v261
    %v276 = vsub.f32 %v243, %v264
    %v277 = vsub.f32 %v244, %v267
    %v278 = vsub.f32 %v245, %v270
    %v279 = vmul.f32 %v271, 1.442695
    %v280 = vpow.pop %v279
    %v281 = vmul.f32 %v272, 1.442695
    %v282 = vpow.pop %v281
    %v283 = vmul.f32 %v273, 1.442695
    %v284 = vpow.pop %v283
    %v285 = vmul.f32 %v274, 1.442695
    %v286 = vpow.pop %v285
    %v287 = vmul.f32 %v275, 1.442695
    %v288 = vpow.pop %v287
    %v289 = vmul.f32 %v276, 1.442695
    %v290 = vpow.pop %v289
    %v291 = vmul.f32 %v277, 1.442695
    %v292 = vpow.pop %v291
    %v293 = vmul.f32 %v278, 1.442695
    %v294 = vpow.pop %v293
    %v295 = vsel %vm246, %v280, 0.0
    %296 = vadd.xlane.f32.xlu0 %v295
    %v297 = vpop.xlane.xlu0 %296
    %v298 = vsel %vm246, %v282, 0.0
    %299 = vadd.xlane.f32.xlu0 %v298
    %v300 = vpop.xlane.xlu0 %299
    %v301 = vsel %vm246, %v284, 0.0
    %302 = vadd.xlane.f32.xlu0 %v301
    %v303 = vpop.xlane.xlu0 %302
    %v304 = vsel %vm246, %v286, 0.0
    %305 = vadd.xlane.f32.xlu0 %v304
    %v306 = vpop.xlane.xlu0 %305
    %v307 = vsel %vm246, %v288, 0.0
    %308 = vadd.xlane.f32.xlu0 %v307
    %v309 = vpop.xlane.xlu0 %308
    %v310 = vsel %vm246, %v290, 0.0
    %311 = vadd.xlane.f32.xlu0 %v310
    %v312 = vpop.xlane.xlu0 %311
    %v313 = vsel %vm246, %v292, 0.0
    %314 = vadd.xlane.f32.xlu0 %v313
    %v315 = vpop.xlane.xlu0 %314
    %v316 = vsel %vm246, %v294, 0.0
    %317 = vadd.xlane.f32.xlu0 %v316
    %v318 = vpop.xlane.xlu0 %317
    %v319 = vrcp.pop %v297
    %v320 = vrcp.pop %v300
    %v321 = vrcp.pop %v303
    %v322 = vrcp.pop %v306
    %v323 = vrcp.pop %v309
    %v324 = vrcp.pop %v312
    %v325 = vrcp.pop %v315
    %v326 = vrcp.pop %v318
    %v327 = vmul.f32 %v280, %v319
    %v328 = vmul.f32 %v282, %v320
    %v329 = vmul.f32 %v284, %v321
    %v330 = vmul.f32 %v286, %v322
    %v331 = vmul.f32 %v288, %v323
    %v332 = vmul.f32 %v290, %v324
    %v333 = vmul.f32 %v292, %v325
    %v334 = vmul.f32 %v294, %v326
    %335 = vrot.lane.b32.xlu0 %v134, 64
    %v336 = vpop.permute.xlu0 %335
    %337 = vrot.lane.b32.xlu0 %v137, 64
    %v338 = vpop.permute.xlu0 %337
    %v342 = vsel %vm246, %v327, 0
    %v345 = vsel %vm246, %v328, 0
    %v348 = vsel %vm246, %v329, 0
    %v351 = vsel %vm246, %v330, 0
    %v354 = vsel %vm246, %v331, 0
    %v357 = vsel %vm246, %v332, 0
    %v360 = vsel %vm246, %v333, 0
    %v363 = vsel %vm246, %v334, 0
    %365 = vmatpush.msra.mxu0 0.0
    %366 = vmatpush.msra.mxu0 0.0
    %367 = vmatpush.msra.mxu0 0.0
    %368 = vmatpush.msra.mxu0 0.0
    %369 = vmatpush.msra.mxu0 0.0
    %370 = vmatpush.msra.mxu0 0.0
    %371 = vmatpush.msra.mxu0 0.0
    %372 = vmatpush.msra.mxu0 0.0
    %373 = vmatpush.msra.mxu0 0.0
    %374 = vmatpush.msra.mxu0 0.0
    %375 = vmatpush.msra.mxu0 0.0
    %376 = vmatpush.msra.mxu0 0.0
    %377 = vmatpush.msra.mxu0 0.0
    %378 = vmatpush.msra.mxu0 0.0
    %379 = vmatpush.msra.mxu0 %v338
    %380 = vmatpush.msra.mxu0 %v336
    %381 = vmatmul.f32.gmra.mxu0 %v342
    %v382 = vpop.f32.mrf.mxu0
    %v383 = vadd.f32 0.0, %v382
    %384 = vmatmul.f32.gmra.mxu0 %v345
    %v385 = vpop.f32.mrf.mxu0
    %v386 = vadd.f32 0.0, %v385
    %387 = vmatmul.f32.gmra.mxu0 %v348
    %v388 = vpop.f32.mrf.mxu0
    %v389 = vadd.f32 0.0, %v388
    %390 = vmatmul.f32.gmra.mxu0 %v351
    %v391 = vpop.f32.mrf.mxu0
    %v392 = vadd.f32 0.0, %v391
    %393 = vmatmul.f32.gmra.mxu0 %v354
    %v394 = vpop.f32.mrf.mxu0
    %v395 = vadd.f32 0.0, %v394
    %396 = vmatmul.f32.gmra.mxu0 %v357
    %v397 = vpop.f32.mrf.mxu0
    %v398 = vadd.f32 0.0, %v397
    %399 = vmatmul.f32.gmra.mxu0 %v360
    %v400 = vpop.f32.mrf.mxu0
    %v401 = vadd.f32 0.0, %v400
    %402 = vmatmul.f32.gmra.mxu0 %v363
    %v403 = vpop.f32.mrf.mxu0
    %v404 = vadd.f32 0.0, %v403
    %405 = vdwg.mxu0
    %v406 = vmul.f32 %v383, %v139
    %v407 = vmul.f32 %v386, %v139
    %v408 = vmul.f32 %v389, %v140
    %v409 = vmul.f32 %v392, %v140
    %v410 = vmul.f32 %v395, %v141
    %v411 = vmul.f32 %v398, %v141
    %v412 = vmul.f32 %v401, %v142
    %v413 = vmul.f32 %v404, %v142
    %v414 = vsel %vm109, %v406, 0.0
    %v415 = vsel %vm109, %v408, 0.0
    %v416 = vadd.f32 %v414, %v415
    %v417 = vsel %vm109, %v410, 0.0
    %v418 = vadd.f32 %v416, %v417
    %v419 = vsel %vm109, %v412, 0.0
    %v420 = vadd.f32 %v418, %v419
    %v421 = vsel %vm109, %v407, 0.0
    %v422 = vsel %vm109, %v409, 0.0
    %v423 = vadd.f32 %v421, %v422
    %v424 = vsel %vm109, %v411, 0.0
    %v425 = vadd.f32 %v423, %v424
    %v426 = vsel %vm109, %v413, 0.0
    %v427 = vadd.f32 %v425, %v426
    %v428 = vperm.slane %v101, 0
    %433 = vrot.lane.b32.xlu0 %v83, 32
    %v434 = vpop.permute.xlu0 %433
    %435 = vrot.lane.b32.xlu0 %v84, 32
    %v436 = vpop.permute.xlu0 %435
    %437 = vrot.lane.b32.xlu0 %v85, 32
    %v438 = vpop.permute.xlu0 %437
    %439 = vrot.lane.b32.xlu0 %v86, 32
    %v440 = vpop.permute.xlu0 %439
    %v446 = vsel %vm109, %v420, 0
    %v449 = vsel %vm109, %v427, 0
    %451 = vmatpush.msra.mxu0 0.0
    %452 = vmatpush.msra.mxu0 0.0
    %453 = vmatpush.msra.mxu0 0.0
    %454 = vmatpush.msra.mxu0 0.0
    %455 = vmatpush.msra.mxu0 0.0
    %456 = vmatpush.msra.mxu0 0.0
    %457 = vmatpush.msra.mxu0 0.0
    %458 = vmatpush.msra.mxu0 0.0
    %459 = vmatpush.msra.mxu0 0.0
    %460 = vmatpush.msra.mxu0 0.0
    %461 = vmatpush.msra.mxu0 0.0
    %462 = vmatpush.msra.mxu0 0.0
    %463 = vmatpush.msra.mxu0 %v440
    %464 = vmatpush.msra.mxu0 %v438
    %465 = vmatpush.msra.mxu0 %v436
    %466 = vmatpush.msra.mxu0 %v434
    %467 = vmatmul.f32.gmra.mxu0 %v446
    %v468 = vpop.f32.mrf.mxu0
    %v469 = vadd.f32 %v428, %v468
    %470 = vmatmul.f32.gmra.mxu0 %v449
    %v471 = vpop.f32.mrf.mxu0
    %v472 = vadd.f32 %v428, %v471
    %473 = vdwg.mxu0
    %v474 = vadd.f32 %v81, %v469
    %v475 = vadd.f32 %v82, %v472
    %v476 = vsel %vm109, %v474, 0.0
    %477 = vadd.xlane.f32.xlu0 %v476
    %v478 = vpop.xlane.xlu0 %477
    %v479 = vsel %vm109, %v475, 0.0
    %480 = vadd.xlane.f32.xlu0 %v479
    %v481 = vpop.xlane.xlu0 %480
    %v482 = vrcp.pop 32.0
    %v483 = vmul.f32 32.0, %v482
    %v484 = vsub.f32 1.0, %v483
    %v485 = vmul.f32 %v482, %v484
    %v486 = vadd.f32 %v482, %v485
    %vm487 = vweird.f32 %v482
    %v488 = vsel %vm487, %v482, %v486
    %v489 = vmul.f32 %v478, %v488
    %v490 = vmul.f32 %v481, %v488
    %v491 = vsub.f32 %v474, %v489
    %v492 = vsub.f32 %v475, %v490
    %v493 = vmul.f32 %v491, %v491
    %v494 = vmul.f32 %v492, %v492
    %v495 = vsel %vm109, %v493, 0.0
    %496 = vadd.xlane.f32.xlu0 %v495
    %v497 = vpop.xlane.xlu0 %496
    %v498 = vsel %vm109, %v494, 0.0
    %499 = vadd.xlane.f32.xlu0 %v498
    %v500 = vpop.xlane.xlu0 %499
    %v501 = vmul.f32 %v497, %v488
    %v502 = vmul.f32 %v500, %v488
    %v503 = vadd.f32 %v501, 1e-05
    %v504 = vadd.f32 %v502, 1e-05
    %v505 = vrsqrt.pop %v503
    %v506 = vmul.f32 %v505, %v503
    %v507 = vmul.f32 %v506, %v505
    %v508 = vmul.f32 0.5, %v507
    %v509 = vsub.f32 1.5, %v508
    %v510 = vmul.f32 %v505, %v509
    %vm511 = vweird.f32 %v503
    %vm512 = vweird.f32 %v505
    %vm513 = vmor %vm511, %vm512
    %v514 = vsel %vm513, %v505, %v510
    %v515 = vrsqrt.pop %v504
    %v516 = vmul.f32 %v515, %v504
    %v517 = vmul.f32 %v516, %v515
    %v518 = vmul.f32 0.5, %v517
    %v519 = vsub.f32 1.5, %v518
    %v520 = vmul.f32 %v515, %v519
    %vm521 = vweird.f32 %v504
    %vm522 = vweird.f32 %v515
    %vm523 = vmor %vm521, %vm522
    %v524 = vsel %vm523, %v515, %v520
    %v525 = vmul.f32 %v491, %v514
    %v526 = vmul.f32 %v492, %v524
    %v527 = vperm.slane %v101, 1
    %v528 = vmul.f32 %v525, %v527
    %v529 = vmul.f32 %v526, %v527
    %v530 = vperm.slane %v101, 2
    %v531 = vadd.f32 %v528, %v530
    %v532 = vadd.f32 %v529, %v530
    %v533 = vperm.slane %v101, 3
    %v535 = vsel %vm109, %v531, 0
    %v538 = vsel %vm109, %v532, 0
    %540 = vmatpush.msra.mxu0 0.0
    %541 = vmatpush.msra.mxu0 0.0
    %542 = vmatpush.msra.mxu0 0.0
    %543 = vmatpush.msra.mxu0 0.0
    %544 = vmatpush.msra.mxu0 0.0
    %545 = vmatpush.msra.mxu0 0.0
    %546 = vmatpush.msra.mxu0 0.0
    %547 = vmatpush.msra.mxu0 0.0
    %548 = vmatpush.msra.mxu0 0.0
    %549 = vmatpush.msra.mxu0 0.0
    %550 = vmatpush.msra.mxu0 0.0
    %551 = vmatpush.msra.mxu0 0.0
    %552 = vmatpush.msra.mxu0 %v90
    %553 = vmatpush.msra.mxu0 %v89
    %554 = vmatpush.msra.mxu0 %v88
    %555 = vmatpush.msra.mxu0 %v87
    %556 = vmatmul.f32.gmra.mxu0 %v535
    %v557 = vpop.f32.mrf.mxu0
    %v558 = vadd.f32 %v533, %v557
    %559 = vmatmul.f32.gmra.mxu0 %v538
    %v560 = vpop.f32.mrf.mxu0
    %v561 = vadd.f32 %v533, %v560
    %562 = vdwg.mxu0
    %571 = vrot.lane.b32.xlu0 %v91, 112
    %v572 = vpop.permute.xlu0 %571
    %573 = vrot.lane.b32.xlu0 %v92, 112
    %v574 = vpop.permute.xlu0 %573
    %575 = vrot.lane.b32.xlu0 %v93, 112
    %v576 = vpop.permute.xlu0 %575
    %577 = vrot.lane.b32.xlu0 %v94, 112
    %v578 = vpop.permute.xlu0 %577
    %579 = vrot.lane.b32.xlu0 %v95, 112
    %v580 = vpop.permute.xlu0 %579
    %581 = vrot.lane.b32.xlu0 %v96, 112
    %v582 = vpop.permute.xlu0 %581
    %583 = vrot.lane.b32.xlu0 %v97, 112
    %v584 = vpop.permute.xlu0 %583
    %585 = vrot.lane.b32.xlu0 %v98, 112
    %v586 = vpop.permute.xlu0 %585
    %v587 = vsel %vm246, %v572, 0
    %v589 = vsel %vm246, %v574, 0
    %v591 = vsel %vm246, %v576, 0
    %v593 = vsel %vm246, %v578, 0
    %v595 = vsel %vm246, %v580, 0
    %v597 = vsel %vm246, %v582, 0
    %v599 = vsel %vm246, %v584, 0
    %v601 = vsel %vm246, %v586, 0
    %603 = vmatpush.msra.mxu0 0.0
    %604 = vmatpush.msra.mxu0 0.0
    %605 = vmatpush.msra.mxu0 0.0
    %606 = vmatpush.msra.mxu0 0.0
    %607 = vmatpush.msra.mxu0 0.0
    %608 = vmatpush.msra.mxu0 0.0
    %609 = vmatpush.msra.mxu0 0.0
    %610 = vmatpush.msra.mxu0 0.0
    %611 = vmatpush.msra.mxu0 0.0
    %612 = vmatpush.msra.mxu0 0.0
    %613 = vmatpush.msra.mxu0 0.0
    %614 = vmatpush.msra.mxu0 0.0
    %615 = vmatpush.msra.mxu0 0.0
    %616 = vmatpush.msra.mxu0 0.0
    %617 = vmatpush.msra.mxu0 %v561
    %618 = vmatpush.msra.mxu0 %v558
    %619 = vmatmul.f32.gmra.mxu0 %v587
    %v620 = vpop.f32.mrf.mxu0
    %v621 = vadd.f32 0.0, %v620
    %622 = vmatmul.f32.gmra.mxu0 %v589
    %v623 = vpop.f32.mrf.mxu0
    %v624 = vadd.f32 0.0, %v623
    %625 = vmatmul.f32.gmra.mxu0 %v591
    %v626 = vpop.f32.mrf.mxu0
    %v627 = vadd.f32 0.0, %v626
    %628 = vmatmul.f32.gmra.mxu0 %v593
    %v629 = vpop.f32.mrf.mxu0
    %v630 = vadd.f32 0.0, %v629
    %631 = vmatmul.f32.gmra.mxu0 %v595
    %v632 = vpop.f32.mrf.mxu0
    %v633 = vadd.f32 0.0, %v632
    %634 = vmatmul.f32.gmra.mxu0 %v597
    %v635 = vpop.f32.mrf.mxu0
    %v636 = vadd.f32 0.0, %v635
    %637 = vmatmul.f32.gmra.mxu0 %v599
    %v638 = vpop.f32.mrf.mxu0
    %v639 = vadd.f32 0.0, %v638
    %640 = vmatmul.f32.gmra.mxu0 %v601
    %v641 = vpop.f32.mrf.mxu0
    %v642 = vadd.f32 0.0, %v641
    %643 = vdwg.mxu0
    %v644 = vmul.f32 %v621, %v139
    %v645 = vmul.f32 %v624, %v139
    %v646 = vmul.f32 %v627, %v140
    %v647 = vmul.f32 %v630, %v140
    %v648 = vmul.f32 %v633, %v141
    %v649 = vmul.f32 %v636, %v141
    %v650 = vmul.f32 %v639, %v142
    %v651 = vmul.f32 %v642, %v142
    %v652 = vsel %vm109, %v644, 0.0
    %v653 = vsel %vm109, %v646, 0.0
    %v654 = vadd.f32 %v652, %v653
    %v655 = vsel %vm109, %v648, 0.0
    %v656 = vadd.f32 %v654, %v655
    %v657 = vsel %vm109, %v650, 0.0
    %v658 = vadd.f32 %v656, %v657
    %v659 = vsel %vm109, %v645, 0.0
    %v660 = vsel %vm109, %v647, 0.0
    %v661 = vadd.f32 %v659, %v660
    %v662 = vsel %vm109, %v649, 0.0
    %v663 = vadd.f32 %v661, %v662
    %v664 = vsel %vm109, %v651, 0.0
    %v665 = vadd.f32 %v663, %v664
    %v666 = vperm.slane %v101, 4
    %671 = vrot.lane.b32.xlu0 %v87, 96
    %v672 = vpop.permute.xlu0 %671
    %673 = vrot.lane.b32.xlu0 %v88, 96
    %v674 = vpop.permute.xlu0 %673
    %675 = vrot.lane.b32.xlu0 %v89, 96
    %v676 = vpop.permute.xlu0 %675
    %677 = vrot.lane.b32.xlu0 %v90, 96
    %v678 = vpop.permute.xlu0 %677
    %v684 = vsel %vm109, %v658, 0
    %v687 = vsel %vm109, %v665, 0
    %689 = vmatpush.msra.mxu0 0.0
    %690 = vmatpush.msra.mxu0 0.0
    %691 = vmatpush.msra.mxu0 0.0
    %692 = vmatpush.msra.mxu0 0.0
    %693 = vmatpush.msra.mxu0 0.0
    %694 = vmatpush.msra.mxu0 0.0
    %695 = vmatpush.msra.mxu0 0.0
    %696 = vmatpush.msra.mxu0 0.0
    %697 = vmatpush.msra.mxu0 0.0
    %698 = vmatpush.msra.mxu0 0.0
    %699 = vmatpush.msra.mxu0 0.0
    %700 = vmatpush.msra.mxu0 0.0
    %701 = vmatpush.msra.mxu0 %v678
    %702 = vmatpush.msra.mxu0 %v676
    %703 = vmatpush.msra.mxu0 %v674
    %704 = vmatpush.msra.mxu0 %v672
    %705 = vmatmul.f32.gmra.mxu0 %v684
    %v706 = vpop.f32.mrf.mxu0
    %v707 = vadd.f32 %v666, %v706
    %708 = vmatmul.f32.gmra.mxu0 %v687
    %v709 = vpop.f32.mrf.mxu0
    %v710 = vadd.f32 %v666, %v709
    %711 = vdwg.mxu0
    %v712 = vadd.f32 %v531, %v707
    %v713 = vadd.f32 %v532, %v710
    %v714 = vsel %vm109, %v712, 0.0
    %715 = vadd.xlane.f32.xlu0 %v714
    %v716 = vpop.xlane.xlu0 %715
    %v717 = vsel %vm109, %v713, 0.0
    %718 = vadd.xlane.f32.xlu0 %v717
    %v719 = vpop.xlane.xlu0 %718
    %v720 = vmul.f32 %v716, %v488
    %v721 = vmul.f32 %v719, %v488
    %v722 = vsub.f32 %v712, %v720
    %v723 = vsub.f32 %v713, %v721
    %v724 = vmul.f32 %v722, %v722
    %v725 = vmul.f32 %v723, %v723
    %v726 = vsel %vm109, %v724, 0.0
    %727 = vadd.xlane.f32.xlu0 %v726
    %v728 = vpop.xlane.xlu0 %727
    %v729 = vsel %vm109, %v725, 0.0
    %730 = vadd.xlane.f32.xlu0 %v729
    %v731 = vpop.xlane.xlu0 %730
    %v732 = vmul.f32 %v728, %v488
    %v733 = vmul.f32 %v731, %v488
    %v734 = vadd.f32 %v732, 1e-05
    %v735 = vadd.f32 %v733, 1e-05
    %v736 = vrsqrt.pop %v734
    %v737 = vmul.f32 %v736, %v734
    %v738 = vmul.f32 %v737, %v736
    %v739 = vmul.f32 0.5, %v738
    %v740 = vsub.f32 1.5, %v739
    %v741 = vmul.f32 %v736, %v740
    %vm742 = vweird.f32 %v734
    %vm743 = vweird.f32 %v736
    %vm744 = vmor %vm742, %vm743
    %v745 = vsel %vm744, %v736, %v741
    %v746 = vrsqrt.pop %v735
    %v747 = vmul.f32 %v746, %v735
    %v748 = vmul.f32 %v747, %v746
    %v749 = vmul.f32 0.5, %v748
    %v750 = vsub.f32 1.5, %v749
    %v751 = vmul.f32 %v746, %v750
    %vm752 = vweird.f32 %v735
    %vm753 = vweird.f32 %v746
    %vm754 = vmor %vm752, %vm753
    %v755 = vsel %vm754, %v746, %v751
    %v756 = vmul.f32 %v722, %v745
    %v757 = vmul.f32 %v723, %v755
    %v758 = vperm.slane %v101, 5
    %v759 = vmul.f32 %v756, %v758
    %v760 = vmul.f32 %v757, %v758
    %v761 = vperm.slane %v101, 6
    %v762 = vadd.f32 %v759, %v761
    %v763 = vadd.f32 %v760, %v761
    %v764 = vperm.slane %v101, 7
    %v765 = vmul.f32 %v762, %v764
    %v766 = vmul.f32 %v763, %v764
    %v767 = vsel %vm109, %v765, 0.0
    %768 = vadd.xlane.f32.xlu0 %v767
    %v769 = vpop.xlane.xlu0 %768
    %v770 = vsel %vm109, %v766, 0.0
    %771 = vadd.xlane.f32.xlu0 %v770
    %v772 = vpop.xlane.xlu0 %771
    %v773 = vperm.slane %v102, 0
    %v774 = vadd.f32 %v769, %v773
    %v775 = vadd.f32 %v772, %v773
    %vm776 = vcmp.ge.f32.partialorder %v774, 0.0
    %vm777 = vcmp.ge.f32.partialorder %v775, 0.0
    %v778 = vmul.f32 %v774, 0.01
    %v779 = vmul.f32 %v775, 0.01
    %v780 = vsel %vm776, %v774, %v778
    %v781 = vsel %vm777, %v775, %v779
    %v782 = vperm.slane %v102, 1
    %v783 = vmul.f32 %v780, %v782
    %v784 = vmul.f32 %v781, %v782
    %v785 = vperm.slane %v102, 2
    %v786 = vadd.f32 %v783, %v785
    %v787 = vadd.f32 %v784, %v785
    %v788 = vxor.u32 %v786, 2147483648
    %v789 = vxor.u32 %v787, 2147483648
    %v790 = vmul.f32 %v788, 1.442695
    %v791 = vpow.pop %v790
    %v792 = vmul.f32 %v789, 1.442695
    %v793 = vpow.pop %v792
    %v794 = vadd.f32 %v791, 1.0
    %v795 = vadd.f32 %v793, 1.0
    %v796 = vrcp.pop %v794
    %v797 = vmul.f32 %v794, %v796
    %v798 = vsub.f32 1.0, %v797
    %v799 = vmul.f32 %v796, %v798
    %v800 = vadd.f32 %v796, %v799
    %vm801 = vweird.f32 %v794
    %vm802 = vweird.f32 %v796
    %vm803 = vmor %vm801, %vm802
    %v804 = vsel %vm803, %v796, %v800
    %v805 = vand.u32 2147483647, %v794
    %vm806 = vcmp.eq.f32.partialorder %v805, 8.507059e+37
    %v807 = vand.u32 %v794, 2147483648
    %v808 = vor.u32 1.1754944e-38, %v807
    %v809 = vsel %vm806, %v808, %v804
    %v810 = vmul.f32 1.0, %v809
    %v811 = vrcp.pop %v795
    %v812 = vmul.f32 %v795, %v811
    %v813 = vsub.f32 1.0, %v812
    %v814 = vmul.f32 %v811, %v813
    %v815 = vadd.f32 %v811, %v814
    %vm816 = vweird.f32 %v795
    %vm817 = vweird.f32 %v811
    %vm818 = vmor %vm816, %vm817
    %v819 = vsel %vm818, %v811, %v815
    %v820 = vand.u32 2147483647, %v795
    %vm821 = vcmp.eq.f32.partialorder %v820, 8.507059e+37
    %v822 = vand.u32 %v795, 2147483648
    %v823 = vor.u32 1.1754944e-38, %v822
    %v824 = vsel %vm821, %v823, %v819
    %v825 = vmul.f32 1.0, %v824
    %v826 = vperm.slane %v100, 0
    %827 = vrot.lane.b32.xlu0 %v87, 64
    %v828 = vpop.permute.xlu0 %827
    %829 = vrot.lane.b32.xlu0 %v88, 64
    %v830 = vpop.permute.xlu0 %829
    %831 = vrot.lane.b32.xlu0 %v89, 64
    %v832 = vpop.permute.xlu0 %831
    %833 = vrot.lane.b32.xlu0 %v90, 64
    %v834 = vpop.permute.xlu0 %833
    %v840 = vsel %vm109, %v762, 0
    %v843 = vsel %vm109, %v763, 0
    %845 = vmatpush.msra.mxu0 0.0
    %846 = vmatpush.msra.mxu0 0.0
    %847 = vmatpush.msra.mxu0 0.0
    %848 = vmatpush.msra.mxu0 0.0
    %849 = vmatpush.msra.mxu0 0.0
    %850 = vmatpush.msra.mxu0 0.0
    %851 = vmatpush.msra.mxu0 0.0
    %852 = vmatpush.msra.mxu0 0.0
    %853 = vmatpush.msra.mxu0 0.0
    %854 = vmatpush.msra.mxu0 0.0
    %855 = vmatpush.msra.mxu0 0.0
    %856 = vmatpush.msra.mxu0 0.0
    %857 = vmatpush.msra.mxu0 %v834
    %858 = vmatpush.msra.mxu0 %v832
    %859 = vmatpush.msra.mxu0 %v830
    %860 = vmatpush.msra.mxu0 %v828
    %861 = vmatmul.f32.gmra.mxu0 %v840
    %v862 = vpop.f32.mrf.mxu0
    %v863 = vadd.f32 %v826, %v862
    %864 = vmatmul.f32.gmra.mxu0 %v843
    %v865 = vpop.f32.mrf.mxu0
    %v866 = vadd.f32 %v826, %v865
    %867 = vdwg.mxu0
    %vm868 = vcmp.ge.f32.partialorder %v863, 0.0
    %vm869 = vcmp.ge.f32.partialorder %v866, 0.0
    %v870 = vmul.f32 %v863, 0.01
    %v871 = vmul.f32 %v866, 0.01
    %v872 = vsel %vm868, %v863, %v870
    %v873 = vsel %vm869, %v866, %v871
    %v874 = vperm.slane %v102, 3
    %875 = vrot.lane.b32.xlu0 %v91, 96
    %v876 = vpop.permute.xlu0 %875
    %877 = vrot.lane.b32.xlu0 %v92, 96
    %v878 = vpop.permute.xlu0 %877
    %879 = vrot.lane.b32.xlu0 %v93, 96
    %v880 = vpop.permute.xlu0 %879
    %881 = vrot.lane.b32.xlu0 %v94, 96
    %v882 = vpop.permute.xlu0 %881
    %883 = vrot.lane.b32.xlu0 %v95, 96
    %v884 = vpop.permute.xlu0 %883
    %885 = vrot.lane.b32.xlu0 %v96, 96
    %v886 = vpop.permute.xlu0 %885
    %887 = vrot.lane.b32.xlu0 %v97, 96
    %v888 = vpop.permute.xlu0 %887
    %889 = vrot.lane.b32.xlu0 %v98, 96
    %v890 = vpop.permute.xlu0 %889
    %vm899 = vcmask 523264
    %v901 = vsel %vm899, %v872, 0
    %v904 = vsel %vm899, %v873, 0
    %906 = vmatpush.msra.mxu0 0.0
    %907 = vmatpush.msra.mxu0 0.0
    %908 = vmatpush.msra.mxu0 0.0
    %909 = vmatpush.msra.mxu0 0.0
    %910 = vmatpush.msra.mxu0 0.0
    %911 = vmatpush.msra.mxu0 0.0
    %912 = vmatpush.msra.mxu0 0.0
    %913 = vmatpush.msra.mxu0 0.0
    %914 = vmatpush.msra.mxu0 %v890
    %915 = vmatpush.msra.mxu0 %v888
    %916 = vmatpush.msra.mxu0 %v886
    %917 = vmatpush.msra.mxu0 %v884
    %918 = vmatpush.msra.mxu0 %v882
    %919 = vmatpush.msra.mxu0 %v880
    %920 = vmatpush.msra.mxu0 %v878
    %921 = vmatpush.msra.mxu0 %v876
    %922 = vmatmul.f32.gmra.mxu0 %v901
    %v923 = vpop.f32.mrf.mxu0
    %v924 = vadd.f32 %v874, %v923
    %925 = vmatmul.f32.gmra.mxu0 %v904
    %v926 = vpop.f32.mrf.mxu0
    %v927 = vadd.f32 %v874, %v926
    %928 = vdwg.mxu0
    %v929 = vmul.f32 %v762, %v810
    %v930 = vmul.f32 %v763, %v825
    %v931 = vsub.f32 1.0, %v810
    %v932 = vsub.f32 1.0, %v825
    %v933 = vmul.f32 %v924, %v931
    %v934 = vmul.f32 %v927, %v932
    %v935 = vadd.f32 %v929, %v933
    %v936 = vadd.f32 %v930, %v934
    %v937 = vsel %vm109, %v935, 0.0
    %938 = vadd.xlane.f32.xlu0 %v937
    %v939 = vpop.xlane.xlu0 %938
    %v940 = vsel %vm109, %v936, 0.0
    %941 = vadd.xlane.f32.xlu0 %v940
    %v942 = vpop.xlane.xlu0 %941
    %v943 = vmul.f32 %v939, %v488
    %v944 = vmul.f32 %v942, %v488
    %v945 = vsub.f32 %v935, %v943
    %v946 = vsub.f32 %v936, %v944
    %v947 = vmul.f32 %v945, %v945
    %v948 = vmul.f32 %v946, %v946
    %v949 = vsel %vm109, %v947, 0.0
    %950 = vadd.xlane.f32.xlu0 %v949
    %v951 = vpop.xlane.xlu0 %950
    %v952 = vsel %vm109, %v948, 0.0
    %953 = vadd.xlane.f32.xlu0 %v952
    %v954 = vpop.xlane.xlu0 %953
    %v955 = vmul.f32 %v951, %v488
    %v956 = vmul.f32 %v954, %v488
    %v957 = vadd.f32 %v955, 1e-05
    %v958 = vadd.f32 %v956, 1e-05
    %v959 = vrsqrt.pop %v957
    %v960 = vmul.f32 %v959, %v957
    %v961 = vmul.f32 %v960, %v959
    %v962 = vmul.f32 0.5, %v961
    %v963 = vsub.f32 1.5, %v962
    %v964 = vmul.f32 %v959, %v963
    %vm965 = vweird.f32 %v957
    %vm966 = vweird.f32 %v959
    %vm967 = vmor %vm965, %vm966
    %v968 = vsel %vm967, %v959, %v964
    %v969 = vrsqrt.pop %v958
    %v970 = vmul.f32 %v969, %v958
    %v971 = vmul.f32 %v970, %v969
    %v972 = vmul.f32 0.5, %v971
    %v973 = vsub.f32 1.5, %v972
    %v974 = vmul.f32 %v969, %v973
    %vm975 = vweird.f32 %v958
    %vm976 = vweird.f32 %v969
    %vm977 = vmor %vm975, %vm976
    %v978 = vsel %vm977, %v969, %v974
    %v979 = vmul.f32 %v945, %v968
    %v980 = vmul.f32 %v946, %v978
    %v981 = vperm.slane %v102, 4
    %v982 = vmul.f32 %v979, %v981
    %v983 = vmul.f32 %v980, %v981
    %v984 = vperm.slane %v102, 5
    %v985 = vadd.f32 %v982, %v984
    %v986 = vadd.f32 %v983, %v984
    %987 = vst.msk [vmem:[#allocation10] sm:$0xff] %vm109, %v985
    %988 = vst.msk [vmem:[#allocation10 + $0x8] sm:$0xff] %vm109, %v986
    // Predicated region
    $region34: #{tpu_custom_call.1} parent=1 // pred_check
      _
    $region35: #{tpu_custom_call.1} parent=1 // pred_check_branch
      %990 = sbr.rel (0) target = $region37
    $region36: #{tpu_custom_call.1} parent=1 // pred_region
      %992 = vsyncadd [#allocation4], 0
      %s993 = sshll.u32 [#allocation10], 4
      %s994 = int_to_ptr.vmem [resolvable:$true] %s993
      %s995 = sshll.u32 %s4, 4
      %s996 = int_to_ptr.hbm [resolvable:$true] %s995
      %1001 = dma.vmem_to_hbm [thread:$0]  %s994, 256, %s996, [#allocation4], 128, 128, 8
    $region37: #{tpu_custom_call.1} parent=1 // pred_fallthru
      _
    // Predicated region
    $region38: #{tpu_custom_call.1} parent=1 // pred_check
      _
    $region39: #{tpu_custom_call.1} parent=1 // pred_check_branch
      %1003 = sbr.rel (0) target = $region41
    $region40: #{tpu_custom_call.1} parent=1 // pred_region
      %1005 = dma.done [#allocation4], 256
    $region41: #{tpu_custom_call.1} parent=1 // pred_fallthru
      _
    %1006 = vsyncpa [#allocation3], 1
    %1007 = vsyncpa [#allocation6], 1
    %1008 = vsyncpa [#allocation9], 1
    %1009 = vsyncpa [#allocation4], 1

</llo_original>
